<compile_context>
chip_gen: v7x
topology: tpu7x:2x2x1
jax: 0.10.0
libtpu: 0.0.40
codegen_flags: <defaults>
</compile_context>

<pallas_src>
import jax
import jax.numpy as jnp
from jax.experimental import pallas as pl
from jax.experimental.pallas import tpu as pltpu

BN_EPS = 1e-5                    # nn.BatchNorm2d default
_LANE = 128
_VMEM_BUDGET = 12 * 1024 * 1024  # double-buffered working-set budget (bytes)
_MAX_TILE = 32768                # hard cap on spatial columns per block


def _round_up(x, m):
    return ((x + m - 1) // m) * m


def _make_stats_kernel(n_chunks, chunk):
    """Pass 1: per-batch Gram matrix and per-channel input sums."""

    def _stats_kernel(x_ref, g_ref, s_ref):
        @pl.when(pl.program_id(1) == 0)
        def _init():
            g_ref[...] = jnp.zeros_like(g_ref)
            s_ref[...] = jnp.zeros_like(s_ref)

        x = x_ref[0]                                          # (K, tile)
        # G += X @ X^T  (contraction over the lane axis, MXU; output is tiny).
        gram = jax.lax.dot_general(
            x, x, (((1,), (1,)), ((), ())),
            preferred_element_type=jnp.float32)               # (K, K)
        # Lane-chunked channel sums: plain VALU vreg adds, no XLU cross-lane
        # reduction per tile; the final 'chunk'-lane reduce happens in XLA.
        part = x[:, 0:chunk]
        for j in range(1, n_chunks):
            part = part + x[:, j * chunk:(j + 1) * chunk]
        g_ref[0] += gram
        s_ref[0] += part

    return _stats_kernel


def _apply_kernel(x_ref, w_ref, shift_ref, o_ref):
    """Pass 2: out = SiLU(W_eff @ x + shift)  (BN folded into W_eff / shift)."""
    z = jnp.dot(w_ref[...], x_ref[0], preferred_element_type=jnp.float32)
    z = z + shift_ref[...]
    o_ref[0] = (z * jax.nn.sigmoid(z)).astype(o_ref.dtype)


def focus_forward(x_nchw, conv_w, bn_gamma, bn_beta):
    """x_nchw: (B, C1, H, W) f32; conv_w: (C2, 4*C1, 1, 1); bn_gamma/beta: (C2,).
    Returns (B, C2, H//2, W//2) f32 with training-mode BN semantics."""
    B, C1, H, W = x_nchw.shape
    # TODO(synk): odd H/W (PyTorch ::2 slicing handles them) is not supported
    # by the reshape-based space_to_depth below.
    assert H % 2 == 0 and W % 2 == 0
    C2 = conv_w.shape[0]
    H2, W2 = H // 2, W // 2
    K = 4 * C1
    HW = H2 * W2

    # --- space-to-depth into the lane-dense [B, K, H2*W2] layout (XLA) -------
    x6 = x_nchw.reshape(B, C1, H2, 2, W2, 2)
    x_kd = jnp.stack(
        [x6[:, :, :, 0, :, 0],    # x[..., ::2,  ::2]
         x6[:, :, :, 1, :, 0],    # x[..., 1::2, ::2]
         x6[:, :, :, 0, :, 1],    # x[..., ::2,  1::2]
         x6[:, :, :, 1, :, 1]],   # x[..., 1::2, 1::2]
        axis=1,
    ).reshape(B, K, HW).astype(jnp.float32)

    w_mat = conv_w[:, :, 0, 0].astype(jnp.float32)            # (C2, K)
    gamma = bn_gamma.astype(jnp.float32)
    beta = bn_beta.astype(jnp.float32)

    # --- spatial tiling: budget-driven, padding-minimising -------------------
    bytes_per_col = 4 * (_round_up(K, 8) + _round_up(C2, 8))   # x + out blocks
    cap = max(_LANE, (_VMEM_BUDGET // (2 * bytes_per_col)) // _LANE * _LANE)
    cap = min(cap, _MAX_TILE)
    n_steps = -(-HW // cap)
    raw_tile = _round_up(-(-HW // n_steps), _LANE)
    quantum = 1024 if raw_tile >= 1024 else _LANE
    tile = _round_up(-(-HW // n_steps), quantum)
    n_t = -(-HW // tile)
    hw_pad = n_t * tile
    if hw_pad != HW:
        x_kd = jnp.pad(x_kd, ((0, 0), (0, 0), (0, hw_pad - HW)))

    chunk = min(1024, tile)          # tile is a multiple of chunk by construction
    n_chunks = tile // chunk

    grid = (B, n_t)
    x_spec = pl.BlockSpec((1, K, tile), lambda b, t: (b, 0, t))
    w_spec = pl.BlockSpec((C2, K), lambda b, t: (0, 0))
    col_spec = pl.BlockSpec((C2, 1), lambda b, t: (0, 0))

    # Pass 1: Gram statistics (batch axis parallel, spatial axis reduction).
    g_part, s_part = pl.pallas_call(
        _make_stats_kernel(n_chunks, chunk),
        out_shape=(jax.ShapeDtypeStruct((B, K, K), jnp.float32),
                   jax.ShapeDtypeStruct((B, K, chunk), jnp.float32)),
        grid=grid,
        in_specs=[x_spec],
        out_specs=(pl.BlockSpec((1, K, K), lambda b, t: (b, 0, 0)),
                   pl.BlockSpec((1, K, chunk), lambda b, t: (b, 0, 0))),
        compiler_params=pltpu.CompilerParams(
            dimension_semantics=("parallel", "arbitrary")),
    )(x_kd)

    # Fold BN (training-mode batch statistics) into conv weight + shift (exact
    # in f32; padded columns contribute 0 to both G and s).
    G = jnp.sum(g_part, axis=0)                        # (K, K)
    s = jnp.sum(s_part, axis=(0, 2))                   # (K,)
    count = float(B * HW)
    mean = (w_mat @ s) / count                         # (C2,)
    ey2 = jnp.sum((w_mat @ G) * w_mat, axis=1) / count # (C2,)  E[y^2]
    var = ey2 - mean * mean                            # biased variance
    scale = gamma * jax.lax.rsqrt(var + BN_EPS)        # (C2,)
    w_eff = w_mat * scale[:, None]                     # (C2, K)
    shift = (beta - mean * scale).reshape(C2, 1)       # (C2, 1)

    # Pass 2: out = SiLU(W_eff @ x + shift), fully parallel over (batch, tiles).
    out_pad = pl.pallas_call(
        _apply_kernel,
        out_shape=jax.ShapeDtypeStruct((B, C2, hw_pad), jnp.float32),
        grid=grid,
        in_specs=[x_spec, w_spec, col_spec],
        out_specs=pl.BlockSpec((1, C2, tile), lambda b, t: (b, 0, t)),
        compiler_params=pltpu.CompilerParams(
            dimension_semantics=("parallel", "parallel")),
    )(x_kd, w_eff, shift)

    # (B, C2, HW) is already NCHW row order -> free reshape, no transpose.
    return out_pad[:, :, :HW].reshape(B, C2, H2, W2)


def _reference(x_nchw, conv_w, bn_gamma, bn_beta):
    """Pure-JAX reference (same math, no Pallas) for validation."""
    x_cat = jnp.concatenate(
        [
            x_nchw[..., ::2, ::2],
            x_nchw[..., 1::2, ::2],
            x_nchw[..., ::2, 1::2],
            x_nchw[..., 1::2, 1::2],
        ],
        axis=1,
    )
    y = jnp.einsum("bkhw,nk->bnhw", x_cat, conv_w[:, :, 0, 0])
    mean = jnp.mean(y, axis=(0, 2, 3), keepdims=True)
    var = jnp.mean((y - mean) ** 2, axis=(0, 2, 3), keepdims=True)
    z = bn_gamma.reshape(1, -1, 1, 1) * (y - mean) * jax.lax.rsqrt(var + BN_EPS) \
        + bn_beta.reshape(1, -1, 1, 1)
    return z * jax.nn.sigmoid(z)


if __name__ == "__main__":
    B, C1, H, W = 2, 4, 16, 16
    C2 = 8

    key = jax.random.PRNGKey(0)
    kx, kw, kg, kb = jax.random.split(key, 4)

    x = jax.random.normal(kx, (B, C1, H, W), dtype=jnp.float32)
    # Shapes per nn.Conv2d(4*C1, C2, 1, bias=False) and nn.BatchNorm2d(C2).
    conv_w = jax.random.normal(kw, (C2, 4 * C1, 1, 1), dtype=jnp.float32) * 0.1
    bn_gamma = 1.0 + 0.1 * jax.random.normal(kg, (C2,), dtype=jnp.float32)
    bn_beta = 0.1 * jax.random.normal(kb, (C2,), dtype=jnp.float32)

    focus = jax.jit(focus_forward)
    out = focus(x, conv_w, bn_gamma, bn_beta)
    jax.block_until_ready(out)

    ref = _reference(x, conv_w, bn_gamma, bn_beta)
    assert out.shape == (B, C2, H // 2, W // 2)
    assert jnp.allclose(out, ref, atol=2e-4, rtol=2e-4)

    print("KERNEL_OK")
</pallas_src>

<mosaic_0001>
module attributes {stable_mosaic.version = 11 : i64} {
  func.func @_stats_kernel(%arg0: i32, %arg1: i32, %arg2: memref<1x16x128xf32, #tpu.memory_space<vmem>>, %arg3: memref<1x16x16xf32, #tpu.memory_space<vmem>>, %arg4: memref<1x16x128xf32, #tpu.memory_space<vmem>>) attributes {dimension_semantics = [#tpu.dimension_semantics<parallel>, #tpu.dimension_semantics<arbitrary>], iteration_bounds = array<i64: 2, 1>, scalar_prefetch = 0 : i64, scratch_operands = 0 : i64, tpu.core_type = #tpu.core_type<tc>, window_params = [{transform_indices = @transform_0, window_bounds = array<i64: 1, 16, 128>}, {transform_indices = @transform_1, window_bounds = array<i64: 1, 16, 16>}, {transform_indices = @transform_2, window_bounds = array<i64: 1, 16, 128>}]} {
    %c0_i32 = arith.constant 0 : i32
    %0 = arith.cmpi eq, %arg1, %c0_i32 : i32
    %1 = arith.extui %0 : i1 to i32
    %c0_i32_0 = arith.constant 0 : i32
    %2 = arith.cmpi ne, %1, %c0_i32_0 : i32
    scf.if %2 {
      %cst_15 = arith.constant 0.000000e+00 : f32
      %18 = vector.broadcast %cst_15 : f32 to vector<1x16x16xf32>
      %c0_16 = arith.constant 0 : index
      %c0_17 = arith.constant 0 : index
      %c0_18 = arith.constant 0 : index
      %19 = vector.load %arg3[%c0_16, %c0_17, %c0_18] : memref<1x16x16xf32, #tpu.memory_space<vmem>>, vector<1x16x16xf32>
      tpu.vector_store %arg3[%c0_16, %c0_17, %c0_18], %18 {strides = array<i32>} : memref<1x16x16xf32, #tpu.memory_space<vmem>>, vector<1x16x16xf32>,
      %cst_19 = arith.constant 0.000000e+00 : f32
      %20 = vector.broadcast %cst_19 : f32 to vector<1x16x128xf32>
      %c0_20 = arith.constant 0 : index
      %c0_21 = arith.constant 0 : index
      %c0_22 = arith.constant 0 : index
      %21 = vector.load %arg4[%c0_20, %c0_21, %c0_22] : memref<1x16x128xf32, #tpu.memory_space<vmem>>, vector<1x16x128xf32>
      tpu.vector_store %arg4[%c0_20, %c0_21, %c0_22], %20 {strides = array<i32>} : memref<1x16x128xf32, #tpu.memory_space<vmem>>, vector<1x16x128xf32>,
    } else {
    }
    %c0 = arith.constant 0 : index
    %c0_1 = arith.constant 0 : index
    %c0_2 = arith.constant 0 : index
    %3 = vector.load %arg2[%c0, %c0_1, %c0_2] : memref<1x16x128xf32, #tpu.memory_space<vmem>>, vector<1x16x128xf32>
    %4 = vector.shape_cast %3 : vector<1x16x128xf32> to vector<16x128xf32>
    %cst = arith.constant dense<0.000000e+00> : vector<16x16xf32>
    %5 = tpu.matmul %4, %4, %cst {dimension_numbers = #tpu.dot_dimension_numbers<[1], [1], [0], [0], [0, 0, 1, 0], [], []>} : vector<16x128xf32>, vector<16x128xf32>, vector<16x16xf32> -> vector<16x16xf32>
    %c0_3 = arith.constant 0 : index
    %c0_4 = arith.constant 0 : index
    %c0_5 = arith.constant 0 : index
    %6 = vector.load %arg3[%c0_3, %c0_4, %c0_5] : memref<1x16x16xf32, #tpu.memory_space<vmem>>, vector<1x16x16xf32>
    %7 = vector.shape_cast %6 : vector<1x16x16xf32> to vector<16x16xf32>
    %8 = arith.addf %7, %5 : vector<16x16xf32>
    %c0_6 = arith.constant 0 : index
    %c0_7 = arith.constant 0 : index
    %c0_8 = arith.constant 0 : index
    %9 = vector.load %arg3[%c0_6, %c0_7, %c0_8] : memref<1x16x16xf32, #tpu.memory_space<vmem>>, vector<1x16x16xf32>
    %10 = vector.shape_cast %9 : vector<1x16x16xf32> to vector<16x16xf32>
    %11 = vector.shape_cast %8 : vector<16x16xf32> to vector<1x16x16xf32>
    tpu.vector_store %arg3[%c0_6, %c0_7, %c0_8], %11 {strides = array<i32>} : memref<1x16x16xf32, #tpu.memory_space<vmem>>, vector<1x16x16xf32>,
    %c0_9 = arith.constant 0 : index
    %c0_10 = arith.constant 0 : index
    %c0_11 = arith.constant 0 : index
    %12 = vector.load %arg4[%c0_9, %c0_10, %c0_11] : memref<1x16x128xf32, #tpu.memory_space<vmem>>, vector<1x16x128xf32>
    %13 = vector.shape_cast %12 : vector<1x16x128xf32> to vector<16x128xf32>
    %14 = arith.addf %13, %4 : vector<16x128xf32>
    %c0_12 = arith.constant 0 : index
    %c0_13 = arith.constant 0 : index
    %c0_14 = arith.constant 0 : index
    %15 = vector.load %arg4[%c0_12, %c0_13, %c0_14] : memref<1x16x128xf32, #tpu.memory_space<vmem>>, vector<1x16x128xf32>
    %16 = vector.shape_cast %15 : vector<1x16x128xf32> to vector<16x128xf32>
    %17 = vector.shape_cast %14 : vector<16x128xf32> to vector<1x16x128xf32>
    tpu.vector_store %arg4[%c0_12, %c0_13, %c0_14], %17 {strides = array<i32>} : memref<1x16x128xf32, #tpu.memory_space<vmem>>, vector<1x16x128xf32>,
    return
  }
  func.func @transform_0(%arg0: i32, %arg1: i32) -> (i32, i32, i32) {
    %c0_i32 = arith.constant 0 : i32
    %c0_i32_0 = arith.constant 0 : i32
    return %arg0, %c0_i32, %arg1 : i32, i32, i32
  }
  func.func @transform_1(%arg0: i32, %arg1: i32) -> (i32, i32, i32) {
    %c0_i32 = arith.constant 0 : i32
    %c0_i32_0 = arith.constant 0 : i32
    %c0_i32_1 = arith.constant 0 : i32
    return %arg0, %c0_i32, %c0_i32_0 : i32, i32, i32
  }
  func.func @transform_2(%arg0: i32, %arg1: i32) -> (i32, i32, i32) {
    %c0_i32 = arith.constant 0 : i32
    %c0_i32_0 = arith.constant 0 : i32
    %c0_i32_1 = arith.constant 0 : i32
    return %arg0, %c0_i32, %c0_i32_0 : i32, i32, i32
  }
}

module attributes {stable_mosaic.version = 11 : i64} {
  func.func @_apply_kernel(%arg0: i32, %arg1: i32, %arg2: memref<1x16x128xf32, #tpu.memory_space<vmem>>, %arg3: memref<8x16xf32, #tpu.memory_space<vmem>>, %arg4: memref<8x1xf32, #tpu.memory_space<vmem>>, %arg5: memref<1x8x128xf32, #tpu.memory_space<vmem>>) attributes {dimension_semantics = [#tpu.dimension_semantics<parallel>, #tpu.dimension_semantics<parallel>], iteration_bounds = array<i64: 2, 1>, scalar_prefetch = 0 : i64, scratch_operands = 0 : i64, tpu.core_type = #tpu.core_type<tc>, window_params = [{transform_indices = @transform_0, window_bounds = array<i64: 1, 16, 128>}, {pipeline_mode = #tpu.pipeline_mode<synchronous>, transform_indices = @transform_1, window_bounds = array<i64: 8, 16>}, {pipeline_mode = #tpu.pipeline_mode<synchronous>, transform_indices = @transform_2, window_bounds = array<i64: 8, 1>}, {transform_indices = @transform_3, window_bounds = array<i64: 1, 8, 128>}]} {
    %c0 = arith.constant 0 : index
    %c0_0 = arith.constant 0 : index
    %0 = vector.load %arg3[%c0, %c0_0] : memref<8x16xf32, #tpu.memory_space<vmem>>, vector<8x16xf32>
    %c0_1 = arith.constant 0 : index
    %c0_2 = arith.constant 0 : index
    %c0_3 = arith.constant 0 : index
    %1 = vector.load %arg2[%c0_1, %c0_2, %c0_3] : memref<1x16x128xf32, #tpu.memory_space<vmem>>, vector<1x16x128xf32>
    %2 = vector.shape_cast %1 : vector<1x16x128xf32> to vector<16x128xf32>
    %cst = arith.constant dense<0.000000e+00> : vector<8x128xf32>
    %3 = tpu.matmul %0, %2, %cst {dimension_numbers = #tpu.dot_dimension_numbers<[1], [0], [0], [1], [0, 0, 1, 1], [], []>} : vector<8x16xf32>, vector<16x128xf32>, vector<8x128xf32> -> vector<8x128xf32>
    %c0_4 = arith.constant 0 : index
    %c0_5 = arith.constant 0 : index
    %4 = vector.load %arg4[%c0_4, %c0_5] : memref<8x1xf32, #tpu.memory_space<vmem>>, vector<8x1xf32>
    %5 = vector.broadcast %4 : vector<8x1xf32> to vector<8x128xf32>
    %6 = arith.addf %3, %5 : vector<8x128xf32>
    %7 = arith.negf %6 : vector<8x128xf32>
    %8 = math.exp %7 : vector<8x128xf32>
    %cst_6 = arith.constant 1.000000e+00 : f32
    %9 = vector.broadcast %cst_6 : f32 to vector<8x128xf32>
    %10 = arith.addf %9, %8 : vector<8x128xf32>
    %11 = arith.divf %9, %10 : vector<8x128xf32>
    %12 = arith.mulf %6, %11 : vector<8x128xf32>
    %c0_7 = arith.constant 0 : index
    %c0_8 = arith.constant 0 : index
    %c0_9 = arith.constant 0 : index
    %13 = vector.load %arg5[%c0_7, %c0_8, %c0_9] : memref<1x8x128xf32, #tpu.memory_space<vmem>>, vector<1x8x128xf32>
    %14 = vector.shape_cast %13 : vector<1x8x128xf32> to vector<8x128xf32>
    %15 = vector.shape_cast %12 : vector<8x128xf32> to vector<1x8x128xf32>
    tpu.vector_store %arg5[%c0_7, %c0_8, %c0_9], %15 {strides = array<i32>} : memref<1x8x128xf32, #tpu.memory_space<vmem>>, vector<1x8x128xf32>,
    return
  }
  func.func @transform_0(%arg0: i32, %arg1: i32) -> (i32, i32, i32) {
    %c0_i32 = arith.constant 0 : i32
    %c0_i32_0 = arith.constant 0 : i32
    return %arg0, %c0_i32, %arg1 : i32, i32, i32
  }
  func.func @transform_1(%arg0: i32, %arg1: i32) -> (i32, i32) {
    %c0_i32 = arith.constant 0 : i32
    %c0_i32_0 = arith.constant 0 : i32
    %c0_i32_1 = arith.constant 0 : i32
    return %c0_i32, %c0_i32_0 : i32, i32
  }
  func.func @transform_2(%arg0: i32, %arg1: i32) -> (i32, i32) {
    %c0_i32 = arith.constant 0 : i32
    %c0_i32_0 = arith.constant 0 : i32
    %c0_i32_1 = arith.constant 0 : i32
    return %c0_i32, %c0_i32_0 : i32, i32
  }
  func.func @transform_3(%arg0: i32, %arg1: i32) -> (i32, i32, i32) {
    %c0_i32 = arith.constant 0 : i32
    %c0_i32_0 = arith.constant 0 : i32
    return %arg0, %c0_i32, %arg1 : i32, i32, i32
  }
}

</mosaic_0001>

<llo_original>
// kernel: focus_forward.2
$region0: #{focus_forward.2}
  #allocation0 [shape = 'u32[]', space=smem, size = 0x4, offset = 0x4, fixed_abs, tag = 'smem constant byte address 0x4 - core index']
  #allocation1 [shape = 'u32[144,128]{1,0:T(1,128)}', space=vmem, size = 0x12000, scoped, tag = 'internal scratch']
  %s0 = inlined_call_operand.vmem [shape: f32[2,16,128], index: 0, kind: input, shape index: {}]
  %s1 = inlined_call_operand.vmem [shape: f32[2,16,16], index: 1, kind: output, shape index: {0}]
  %s2 = inlined_call_operand.vmem [shape: f32[2,16,128], index: 2, kind: output, shape index: {1}]
  %3 = xla_tuple %s1, %s2
  %s4 = sld [smem:[#allocation0]]
  $region49: #{focus_forward.2} parent=0
    _
  %s6 = ssub.s32 1, %s4
  %s7 = scalar_select 0, %s6, %s4
  loop: start=0, step=1, limit=4
  $region2: #{focus_forward.2} parent=0 // loop_pre_header
    _
  $region3: #{focus_forward.2} parent=0 // loop_header
    %s9 = sphi 0, %s13
    %p10 = scmp.ge.s32.totalorder %s9, 4
    %s16 = sphi 0, %s28
    %s17 = sphi 0, %s24
    %s18 = sphi 0, %s16
    %s19 = sphi 0, %s17
    %s20 = sphi 0, %s18
    %s21 = sphi 0, %s19
    %s33 = sphi 0, %s35
    %s36 = sphi 0, %s33
    %s37 = sphi 0, %s36
    %s53 = sphi 0, %s37
    %s59 = sphi 0, %s61
    %s62 = sphi 0, %s59
    %s63 = sphi 0, %s62
    %s79 = sphi 0, %s63
    %s85 = sphi 0, %s87
    %s88 = sphi 0, %s85
    %s89 = sphi 0, %s88
    %s105 = sphi 0, %s89
  $region4: #{focus_forward.2} parent=0 // loop_header_branch
    %12 = sbr.rel (%p10) target = $region8
  $region5: #{focus_forward.2} parent=0 // loop_body
    %s14 = ssub.s32 %s9, 1
    %s15 = ssub.s32 %s9, 2
    %s22 = sadd.s32 1, %s17
    %p23 = scmp.ge.s32.totalorder %s22, 1
    %s24 = scalar_select %p23, 0, %s22
    %s25 = sadd.s32 1, %s16
    %s26 = scalar_select %p23, %s25, %s16
    %p27 = scmp.ge.s32.totalorder %s26, 2
    %s28 = scalar_select %p27, 0, %s26
    %s29 = ssub.s32 %s16, %s28
    %s30 = ssub.s32 %s17, %s24
    %s31 = sor.u32 %s29, %s30
    %p32 = scmp.eq.s32.totalorder %s31, 0
    %s34 = sadd.s32 %s33, 1
    %s35 = scalar_select %p32, %s33, %s34
    %p38 = pneg %p32
    %p39 = scmp.eq.s32.totalorder %s9, 1
    %p40 = por %p38, %p39
    %p41 = scmp.ne.s32.totalorder %s33, %s36
    %p42 = scmp.eq.s32.totalorder %s9, 0
    %p43 = por %p41, %p42
    %p44 = scmp.ne.s32.totalorder %s33, %s36
    %p45 = scmp.eq.s32.totalorder %s14, 1
    %p46 = por %p44, %p45
    %p47 = scmp.ne.s32.totalorder %s36, %s37
    %p48 = scmp.eq.s32.totalorder %s14, 0
    %p49 = por %p47, %p48
    %p50 = scmp.ne.s32.totalorder %s36, %s37
    %p51 = scmp.eq.s32.totalorder %s15, 1
    %p52 = por %p50, %p51
    %p54 = scmp.ne.s32.totalorder %s37, %s53
    %p55 = scmp.eq.s32.totalorder %s15, 0
    %p56 = por %p54, %p55
    %s57 = ssub.s32 %s16, %s28
    %p58 = scmp.eq.s32.totalorder %s57, 0
    %s60 = sadd.s32 %s59, 1
    %s61 = scalar_select %p58, %s59, %s60
    %p64 = pneg %p58
    %p65 = scmp.eq.s32.totalorder %s9, 1
    %p66 = por %p64, %p65
    %p67 = scmp.ne.s32.totalorder %s59, %s62
    %p68 = scmp.eq.s32.totalorder %s9, 0
    %p69 = por %p67, %p68
    %p70 = scmp.ne.s32.totalorder %s59, %s62
    %p71 = scmp.eq.s32.totalorder %s14, 1
    %p72 = por %p70, %p71
    %p73 = scmp.ne.s32.totalorder %s62, %s63
    %p74 = scmp.eq.s32.totalorder %s14, 0
    %p75 = por %p73, %p74
    %p76 = scmp.ne.s32.totalorder %s62, %s63
    %p77 = scmp.eq.s32.totalorder %s15, 1
    %p78 = por %p76, %p77
    %p80 = scmp.ne.s32.totalorder %s63, %s79
    %p81 = scmp.eq.s32.totalorder %s15, 0
    %p82 = por %p80, %p81
    %s83 = ssub.s32 %s16, %s28
    %p84 = scmp.eq.s32.totalorder %s83, 0
    %s86 = sadd.s32 %s85, 1
    %s87 = scalar_select %p84, %s85, %s86
    %p90 = pneg %p84
    %p91 = scmp.eq.s32.totalorder %s9, 1
    %p92 = por %p90, %p91
    %p93 = scmp.ne.s32.totalorder %s85, %s88
    %p94 = scmp.eq.s32.totalorder %s9, 0
    %p95 = por %p93, %p94
    %p96 = scmp.ne.s32.totalorder %s85, %s88
    %p97 = scmp.eq.s32.totalorder %s14, 1
    %p98 = por %p96, %p97
    %p99 = scmp.ne.s32.totalorder %s88, %s89
    %p100 = scmp.eq.s32.totalorder %s14, 0
    %p101 = por %p99, %p100
    %p102 = scmp.ne.s32.totalorder %s88, %s89
    %p103 = scmp.eq.s32.totalorder %s15, 1
    %p104 = por %p102, %p103
    %p106 = scmp.ne.s32.totalorder %s89, %s105
    %p107 = scmp.eq.s32.totalorder %s15, 0
    %p108 = por %p106, %p107
    %p109 = scmp.le.s32.totalorder 1, %s9
    %p110 = scmp.lt.s32.totalorder %s9, 3
    %p111 = pnand %p109, %p110
    %p112 = pneg %p111
    // Predicated region
    $region9: #{focus_forward.2} parent=5 // pred_check
      _
    $region10: #{focus_forward.2} parent=5 // pred_check_branch
      %114 = sbr.rel (%p111) target = $region12
    $region11: #{focus_forward.2} parent=5 // pred_region
      %s115 = ssub.s32 %s9, 1
    $region12: #{focus_forward.2} parent=5 // pred_fallthru
      _
    %p116 = scmp.lt.s32.totalorder %s9, 2
    // Predicated region
    $region13: #{focus_forward.2} parent=5 // pred_check
      %p117 = pneg %p116
    $region14: #{focus_forward.2} parent=5 // pred_check_branch
      %119 = sbr.rel (%p117) target = $region16
    $region15: #{focus_forward.2} parent=5 // pred_region
      // Predicated region
      $region17: #{focus_forward.2} parent=15 // pred_check
        %p120 = pneg %p43
      $region18: #{focus_forward.2} parent=15 // pred_check_branch
        %122 = sbr.rel (%p120) target = $region20
      $region19: #{focus_forward.2} parent=15 // pred_region
        %p123 = scmp.lt.s32.totalorder %s16, 1
        %s124 = scalar_select %p123, %s16, 1
        %p125 = scmp.lt.s32.totalorder %s17, 0
        %s126 = scalar_select %p125, %s17, 0
        %s127 = smul.addr %s124, 2
        %s128 = sadd.s32 %s126, %s127
        %s129 = smul.addr %s128, 8
        %s130 = scalar_lea.vmem %s0, %s129
      $region20: #{focus_forward.2} parent=15 // pred_fallthru
        _
    $region16: #{focus_forward.2} parent=5 // pred_fallthru
      _
    %p131 = scmp.le.s32.totalorder 1, %s9
    %p132 = scmp.lt.s32.totalorder %s9, 3
    %p133 = pnand %p131, %p132
    %p134 = pneg %p133
    // Predicated region
    $region21: #{focus_forward.2} parent=5 // pred_check
      _
    $region22: #{focus_forward.2} parent=5 // pred_check_branch
      %136 = sbr.rel (%p133) target = $region24
    $region23: #{focus_forward.2} parent=5 // pred_region
      %s137 = ssub.s32 %s9, 1
      %p138 = scmp.lt.s32.totalorder %s18, 1
      %s139 = scalar_select %p138, %s18, 1
      %p140 = scmp.lt.s32.totalorder %s19, 0
      %s141 = scalar_select %p140, %s19, 0
      %s142 = smul.addr %s139, 2
      %s143 = sadd.s32 %s141, %s142
      %s144 = smul.addr %s143, 8
      %s145 = scalar_lea.vmem %s0, %s144
      %p146 = pneg %p49
      %p147 = pneg %p46
      %p148 = pneg %p75
      %p149 = pneg %p72
      %p150 = scmp.lt.s32.totalorder %s18, 1
      %s151 = scalar_select %p150, %s18, 1
      %s152 = smul.addr %s151, 2
      %s153 = smul.addr %s152, 8
      %s154 = scalar_lea.vmem %s1, %s153
      %p155 = pneg %p101
      %p156 = pneg %p98
      %p157 = scmp.lt.s32.totalorder %s18, 1
      %s158 = scalar_select %p157, %s18, 1
      %s159 = smul.addr %s158, 2
      %s160 = smul.addr %s159, 8
      %s161 = scalar_lea.vmem %s2, %s160
      %p162 = scmp.lt.s32.totalorder %s18, 1
      %s163 = scalar_select %p162, %s18, 1
      %p164 = scmp.lt.s32.totalorder %s19, 0
      %s165 = scalar_select %p164, %s19, 0
      %s166 = smul.addr %s163, 2
      %s167 = sadd.s32 %s165, %s166
      %s168 = smul.addr %s167, 8
      %s169 = scalar_lea.vmem %s0, %s168
      %p170 = scmp.lt.s32.totalorder %s18, 1
      %s171 = scalar_select %p170, %s18, 1
      %s172 = smul.addr %s171, 2
      %s173 = smul.addr %s172, 8
      %s174 = scalar_lea.vmem %s1, %s173
      %p175 = scmp.lt.s32.totalorder %s18, 1
      %s176 = scalar_select %p175, %s18, 1
      %s177 = smul.addr %s176, 2
      %s178 = smul.addr %s177, 8
      %s179 = scalar_lea.vmem %s2, %s178
      %p180 = scmp.eq.s32.totalorder %s19, 0
      // Predicated region
      $region25: #{focus_forward.2} parent=23 // pred_check
        %p181 = pneg %p180
      $region26: #{focus_forward.2} parent=23 // pred_check_branch
        %183 = sbr.rel (%p181) target = $region28
      $region27: #{focus_forward.2} parent=23 // pred_region
        %vm184 = vcmask 130048
        %185 = vst.msk [vmem:[%s174] sm:$0xff] %vm184, 0.0
        %186 = vst.msk [vmem:[%s174 + $0x8] sm:$0xff] %vm184, 0.0
        %187 = vst [vmem:[%s179] sm:$0xff] 0.0
        %188 = vst [vmem:[%s179 + $0x8] sm:$0xff] 0.0
      $region28: #{focus_forward.2} parent=23 // pred_fallthru
        _
      %v189 = vld [vmem:[%s169] sm:$0xff]
      %v190 = vld [vmem:[%s169 + $0x8] sm:$0xff]
      %191 = vmatprep.subr.mxu0 0.0
      %192 = vmatpush1.xpose.msra.mxu0 %v189
      %193 = vmatprep.subr.mxu0 0.0
      %194 = vmatpush1.xpose.msra.mxu0 %v190
      %195 = vmatprep.subr.mxu0 0.0
      %196 = vmatpush1.xpose.msra.mxu0 0.0
      %197 = vmatprep.subr.mxu0 0.0
      %198 = vmatpush1.xpose.msra.mxu0 0.0
      %199 = vmatprep.subr.mxu0 0.0
      %200 = vmatpush1.xpose.msra.mxu0 0.0
      %201 = vmatprep.subr.mxu0 0.0
      %202 = vmatpush1.xpose.msra.mxu0 0.0
      %203 = vmatprep.subr.mxu0 0.0
      %204 = vmatpush1.xpose.msra.mxu0 0.0
      %205 = vmatprep.subr.mxu0 0.0
      %206 = vmatpush1.xpose.msra.mxu0 0.0
      %207 = vmatprep.subr.mxu0 0.0
      %208 = vmatpush1.xpose.msra.mxu0 0.0
      %209 = vmatprep.subr.mxu0 0.0
      %210 = vmatpush1.xpose.msra.mxu0 0.0
      %211 = vmatprep.subr.mxu0 0.0
      %212 = vmatpush1.xpose.msra.mxu0 0.0
      %213 = vmatprep.subr.mxu0 0.0
      %214 = vmatpush1.xpose.msra.mxu0 0.0
      %215 = vmatprep.subr.mxu0 0.0
      %216 = vmatpush1.xpose.msra.mxu0 0.0
      %217 = vmatprep.subr.mxu0 0.0
      %218 = vmatpush1.xpose.msra.mxu0 0.0
      %219 = vmatprep.subr.mxu0 0.0
      %220 = vmatpush1.xpose.msra.mxu0 0.0
      %221 = vmatprep.subr.mxu0 0.0
      %222 = vmatpush1.xpose.msra.mxu0 0.0
      %223 = vmatprep.subr.mxu0 0.0
      %224 = vmatpush1.xpose.msra.mxu0 0.0
      %225 = vmatprep.subr.mxu0 0.0
      %226 = vmatpush1.xpose.msra.mxu0 0.0
      %227 = vmatprep.subr.mxu0 0.0
      %228 = vmatpush1.xpose.msra.mxu0 0.0
      %229 = vmatprep.subr.mxu0 0.0
      %230 = vmatpush1.xpose.msra.mxu0 0.0
      %231 = vmatprep.subr.mxu0 0.0
      %232 = vmatpush1.xpose.msra.mxu0 0.0
      %233 = vmatprep.subr.mxu0 0.0
      %234 = vmatpush1.xpose.msra.mxu0 0.0
      %235 = vmatprep.subr.mxu0 0.0
      %236 = vmatpush1.xpose.msra.mxu0 0.0
      %237 = vmatprep.subr.mxu0 0.0
      %238 = vmatpush1.xpose.msra.mxu0 0.0
      %239 = vmatprep.subr.mxu0 0.0
      %240 = vmatpush1.xpose.msra.mxu0 0.0
      %241 = vmatprep.subr.mxu0 0.0
      %242 = vmatpush1.xpose.msra.mxu0 0.0
      %243 = vmatprep.subr.mxu0 0.0
      %244 = vmatpush1.xpose.msra.mxu0 0.0
      %245 = vmatprep.subr.mxu0 0.0
      %246 = vmatpush1.xpose.msra.mxu0 0.0
      %247 = vmatprep.subr.mxu0 0.0
      %248 = vmatpush1.xpose.msra.mxu0 0.0
      %249 = vmatprep.subr.mxu0 0.0
      %250 = vmatpush1.xpose.msra.mxu0 0.0
      %251 = vmatprep.subr.mxu0 0.0
      %252 = vmatpush1.xpose.msra.mxu0 0.0
      %253 = vmatprep.subr.mxu0 0.0
      %254 = vmatpush1.xpose.msra.mxu0 0.0
      %255 = vmatprep.mubr.f32.mxu0 0.0
      %256 = vmatmul.mubr.f32.gmra.mrb[0].mxu0 %v189
      %v257 = vpop.f32.mrb[0].mxu0
      %v258 = vadd.f32 0.0, %v257
      %v259 = vpop.f32.mrb[0].mxu0
      %260 = vmatprep.mubr.f32.mxu0 0.0
      %261 = vmatmul.mubr.f32.gmra.mrb[0].mxu0 %v190
      %v262 = vpop.f32.mrb[0].mxu0
      %v263 = vadd.f32 0.0, %v262
      %v264 = vpop.f32.mrb[0].mxu0
      %265 = vdwg.mxu0
      %v266 = vld [vmem:[%s174] sm:$0xff]
      %v267 = vld [vmem:[%s174 + $0x8] sm:$0xff]
      %v268 = vadd.f32 %v266, %v258
      %v269 = vadd.f32 %v267, %v263
      %vm270 = vcmask 130048
      %271 = vst.msk [vmem:[%s174] sm:$0xff] %vm270, %v268
      %272 = vst.msk [vmem:[%s174 + $0x8] sm:$0xff] %vm270, %v269
      %v273 = vld [vmem:[%s179] sm:$0xff]
      %v274 = vld [vmem:[%s179 + $0x8] sm:$0xff]
      %v275 = vadd.f32 %v273, %v189
      %v276 = vadd.f32 %v274, %v190
      %277 = vst [vmem:[%s179] sm:$0xff] %v275
      %278 = vst [vmem:[%s179 + $0x8] sm:$0xff] %v276
      %p279 = scmp.lt.s32.totalorder %s18, 1
      %s280 = scalar_select %p279, %s18, 1
      %s281 = smul.addr %s280, 2
      %s282 = smul.addr %s281, 8
      %s283 = scalar_lea.vmem %s1, %s282
      %p284 = scmp.lt.s32.totalorder %s18, 1
      %s285 = scalar_select %p284, %s18, 1
      %s286 = smul.addr %s285, 2
      %s287 = smul.addr %s286, 8
      %s288 = scalar_lea.vmem %s2, %s287
      // Predicated region
      $region29: #{focus_forward.2} parent=23 // pred_check
        %p289 = pneg %p72
      $region30: #{focus_forward.2} parent=23 // pred_check_branch
        %291 = sbr.rel (%p289) target = $region32
      $region31: #{focus_forward.2} parent=23 // pred_region
        _
      $region32: #{focus_forward.2} parent=23 // pred_fallthru
        _
      // Predicated region
      $region33: #{focus_forward.2} parent=23 // pred_check
        %p292 = pneg %p98
      $region34: #{focus_forward.2} parent=23 // pred_check_branch
        %294 = sbr.rel (%p292) target = $region36
      $region35: #{focus_forward.2} parent=23 // pred_region
        _
      $region36: #{focus_forward.2} parent=23 // pred_fallthru
        _
    $region24: #{focus_forward.2} parent=5 // pred_fallthru
      _
    %p295 = scmp.le.s32.totalorder 2, %s9
    // Predicated region
    $region37: #{focus_forward.2} parent=5 // pred_check
      %p296 = pneg %p295
    $region38: #{focus_forward.2} parent=5 // pred_check_branch
      %298 = sbr.rel (%p296) target = $region40
    $region39: #{focus_forward.2} parent=5 // pred_region
      %s299 = ssub.s32 %s9, 2
      // Predicated region
      $region41: #{focus_forward.2} parent=39 // pred_check
        %p300 = pneg %p78
      $region42: #{focus_forward.2} parent=39 // pred_check_branch
        %302 = sbr.rel (%p300) target = $region44
      $region43: #{focus_forward.2} parent=39 // pred_region
        %p303 = scmp.lt.s32.totalorder %s20, 1
        %s304 = scalar_select %p303, %s20, 1
        %s305 = smul.addr %s304, 2
        %s306 = smul.addr %s305, 8
        %s307 = scalar_lea.vmem %s1, %s306
      $region44: #{focus_forward.2} parent=39 // pred_fallthru
        _
      // Predicated region
      $region45: #{focus_forward.2} parent=39 // pred_check
        %p308 = pneg %p104
      $region46: #{focus_forward.2} parent=39 // pred_check_branch
        %310 = sbr.rel (%p308) target = $region48
      $region47: #{focus_forward.2} parent=39 // pred_region
        %p311 = scmp.lt.s32.totalorder %s20, 1
        %s312 = scalar_select %p311, %s20, 1
        %s313 = smul.addr %s312, 2
        %s314 = smul.addr %s313, 8
        %s315 = scalar_lea.vmem %s2, %s314
      $region48: #{focus_forward.2} parent=39 // pred_fallthru
        _
    $region40: #{focus_forward.2} parent=5 // pred_fallthru
      _
  $region6: #{focus_forward.2} parent=0 // loop_footer
    %s13 = sadd.s32 1, %s9
  $region7: #{focus_forward.2} parent=0 // loop_footer_branch
    %8 = sbr.rel target = $region3
  $region8: #{focus_forward.2} parent=0 // loop_exit
    _

// kernel: focus_forward.3
$region0: #{focus_forward.3}
  #allocation0 [shape = 'u32[]', space=smem, size = 0x4, offset = 0x4, fixed_abs, tag = 'smem constant byte address 0x4 - core index']
  #allocation1 [shape = 'u32[144,128]{1,0:T(1,128)}', space=vmem, size = 0x12000, scoped, tag = 'internal scratch']
  %s0 = inlined_call_operand.vmem [shape: f32[2,16,128], index: 0, kind: input, shape index: {}]
  %s1 = inlined_call_operand.vmem [shape: f32[8,16], index: 1, kind: input, shape index: {}]
  %s2 = inlined_call_operand.vmem [shape: f32[8,1], index: 2, kind: input, shape index: {}]
  %s3 = inlined_call_operand.vmem [shape: f32[2,8,128], index: 3, kind: output, shape index: {}]
  %s4 = sld [smem:[#allocation0]]
  $region45: #{focus_forward.3} parent=0
    _
  %s6 = ssub.s32 1, %s4
  %s7 = scalar_select 0, %s6, %s4
  loop: start=0, step=1, limit=4
  $region2: #{focus_forward.3} parent=0 // loop_pre_header
    _
  $region3: #{focus_forward.3} parent=0 // loop_header
    %s9 = sphi 0, %s13
    %p10 = scmp.ge.s32.totalorder %s9, 4
    %s16 = sphi 0, %s28
    %s17 = sphi 0, %s24
    %s18 = sphi 0, %s16
    %s19 = sphi 0, %s17
    %s20 = sphi 0, %s18
    %s21 = sphi 0, %s19
    %s33 = sphi 0, %s35
    %s36 = sphi 0, %s33
    %s37 = sphi 0, %s36
    %s53 = sphi 0, %s37
    %s57 = sphi 0, %s57
    %s59 = sphi 0, %s57
    %s60 = sphi 0, %s59
    %s74 = sphi 0, %s60
    %s78 = sphi 0, %s78
    %s80 = sphi 0, %s78
    %s81 = sphi 0, %s80
    %s95 = sphi 0, %s81
    %s103 = sphi 0, %s105
    %s106 = sphi 0, %s103
    %s107 = sphi 0, %s106
    %s123 = sphi 0, %s107
  $region4: #{focus_forward.3} parent=0 // loop_header_branch
    %12 = sbr.rel (%p10) target = $region8
  $region5: #{focus_forward.3} parent=0 // loop_body
    %s14 = ssub.s32 %s9, 1
    %s15 = ssub.s32 %s9, 2
    %s22 = sadd.s32 1, %s17
    %p23 = scmp.ge.s32.totalorder %s22, 1
    %s24 = scalar_select %p23, 0, %s22
    %s25 = sadd.s32 1, %s16
    %s26 = scalar_select %p23, %s25, %s16
    %p27 = scmp.ge.s32.totalorder %s26, 2
    %s28 = scalar_select %p27, 0, %s26
    %s29 = ssub.s32 %s16, %s28
    %s30 = ssub.s32 %s17, %s24
    %s31 = sor.u32 %s29, %s30
    %p32 = scmp.eq.s32.totalorder %s31, 0
    %s34 = sadd.s32 %s33, 1
    %s35 = scalar_select %p32, %s33, %s34
    %p38 = pneg %p32
    %p39 = scmp.eq.s32.totalorder %s9, 1
    %p40 = por %p38, %p39
    %p41 = scmp.ne.s32.totalorder %s33, %s36
    %p42 = scmp.eq.s32.totalorder %s9, 0
    %p43 = por %p41, %p42
    %p44 = scmp.ne.s32.totalorder %s33, %s36
    %p45 = scmp.eq.s32.totalorder %s14, 1
    %p46 = por %p44, %p45
    %p47 = scmp.ne.s32.totalorder %s36, %s37
    %p48 = scmp.eq.s32.totalorder %s14, 0
    %p49 = por %p47, %p48
    %p50 = scmp.ne.s32.totalorder %s36, %s37
    %p51 = scmp.eq.s32.totalorder %s15, 1
    %p52 = por %p50, %p51
    %p54 = scmp.ne.s32.totalorder %s37, %s53
    %p55 = scmp.eq.s32.totalorder %s15, 0
    %p56 = por %p54, %p55
    %s58 = sadd.s32 %s57, 1
    %p61 = scmp.eq.s32.totalorder %s9, 1
    %p62 = scmp.ne.s32.totalorder %s57, %s59
    %p63 = scmp.eq.s32.totalorder %s9, 0
    %p64 = por %p62, %p63
    %p65 = scmp.ne.s32.totalorder %s57, %s59
    %p66 = scmp.eq.s32.totalorder %s14, 1
    %p67 = por %p65, %p66
    %p68 = scmp.ne.s32.totalorder %s59, %s60
    %p69 = scmp.eq.s32.totalorder %s14, 0
    %p70 = por %p68, %p69
    %p71 = scmp.ne.s32.totalorder %s59, %s60
    %p72 = scmp.eq.s32.totalorder %s15, 1
    %p73 = por %p71, %p72
    %p75 = scmp.ne.s32.totalorder %s60, %s74
    %p76 = scmp.eq.s32.totalorder %s15, 0
    %p77 = por %p75, %p76
    %s79 = sadd.s32 %s78, 1
    %p82 = scmp.eq.s32.totalorder %s9, 1
    %p83 = scmp.ne.s32.totalorder %s78, %s80
    %p84 = scmp.eq.s32.totalorder %s9, 0
    %p85 = por %p83, %p84
    %p86 = scmp.ne.s32.totalorder %s78, %s80
    %p87 = scmp.eq.s32.totalorder %s14, 1
    %p88 = por %p86, %p87
    %p89 = scmp.ne.s32.totalorder %s80, %s81
    %p90 = scmp.eq.s32.totalorder %s14, 0
    %p91 = por %p89, %p90
    %p92 = scmp.ne.s32.totalorder %s80, %s81
    %p93 = scmp.eq.s32.totalorder %s15, 1
    %p94 = por %p92, %p93
    %p96 = scmp.ne.s32.totalorder %s81, %s95
    %p97 = scmp.eq.s32.totalorder %s15, 0
    %p98 = por %p96, %p97
    %s99 = ssub.s32 %s16, %s28
    %s100 = ssub.s32 %s17, %s24
    %s101 = sor.u32 %s99, %s100
    %p102 = scmp.eq.s32.totalorder %s101, 0
    %s104 = sadd.s32 %s103, 1
    %s105 = scalar_select %p102, %s103, %s104
    %p108 = pneg %p102
    %p109 = scmp.eq.s32.totalorder %s9, 1
    %p110 = por %p108, %p109
    %p111 = scmp.ne.s32.totalorder %s103, %s106
    %p112 = scmp.eq.s32.totalorder %s9, 0
    %p113 = por %p111, %p112
    %p114 = scmp.ne.s32.totalorder %s103, %s106
    %p115 = scmp.eq.s32.totalorder %s14, 1
    %p116 = por %p114, %p115
    %p117 = scmp.ne.s32.totalorder %s106, %s107
    %p118 = scmp.eq.s32.totalorder %s14, 0
    %p119 = por %p117, %p118
    %p120 = scmp.ne.s32.totalorder %s106, %s107
    %p121 = scmp.eq.s32.totalorder %s15, 1
    %p122 = por %p120, %p121
    %p124 = scmp.ne.s32.totalorder %s107, %s123
    %p125 = scmp.eq.s32.totalorder %s15, 0
    %p126 = por %p124, %p125
    %p127 = scmp.le.s32.totalorder 1, %s9
    %p128 = scmp.lt.s32.totalorder %s9, 3
    %p129 = pnand %p127, %p128
    %p130 = pneg %p129
    // Predicated region
    $region9: #{focus_forward.3} parent=5 // pred_check
      _
    $region10: #{focus_forward.3} parent=5 // pred_check_branch
      %132 = sbr.rel (%p129) target = $region12
    $region11: #{focus_forward.3} parent=5 // pred_region
      %s133 = ssub.s32 %s9, 1
      // Predicated region
      $region13: #{focus_forward.3} parent=11 // pred_check
        %p134 = pneg %p70
      $region14: #{focus_forward.3} parent=11 // pred_check_branch
        %136 = sbr.rel (%p134) target = $region16
      $region15: #{focus_forward.3} parent=11 // pred_region
        _
      $region16: #{focus_forward.3} parent=11 // pred_fallthru
        _
      // Predicated region
      $region17: #{focus_forward.3} parent=11 // pred_check
        %p137 = pneg %p91
      $region18: #{focus_forward.3} parent=11 // pred_check_branch
        %139 = sbr.rel (%p137) target = $region20
      $region19: #{focus_forward.3} parent=11 // pred_region
        _
      $region20: #{focus_forward.3} parent=11 // pred_fallthru
        _
    $region12: #{focus_forward.3} parent=5 // pred_fallthru
      _
    %p140 = scmp.lt.s32.totalorder %s9, 2
    // Predicated region
    $region21: #{focus_forward.3} parent=5 // pred_check
      %p141 = pneg %p140
    $region22: #{focus_forward.3} parent=5 // pred_check_branch
      %143 = sbr.rel (%p141) target = $region24
    $region23: #{focus_forward.3} parent=5 // pred_region
      // Predicated region
      $region25: #{focus_forward.3} parent=23 // pred_check
        %p144 = pneg %p43
      $region26: #{focus_forward.3} parent=23 // pred_check_branch
        %146 = sbr.rel (%p144) target = $region28
      $region27: #{focus_forward.3} parent=23 // pred_region
        %p147 = scmp.lt.s32.totalorder %s16, 1
        %s148 = scalar_select %p147, %s16, 1
        %p149 = scmp.lt.s32.totalorder %s17, 0
        %s150 = scalar_select %p149, %s17, 0
        %s151 = smul.addr %s148, 2
        %s152 = sadd.s32 %s150, %s151
        %s153 = smul.addr %s152, 8
        %s154 = scalar_lea.vmem %s0, %s153
      $region28: #{focus_forward.3} parent=23 // pred_fallthru
        _
    $region24: #{focus_forward.3} parent=5 // pred_fallthru
      _
    %p155 = scmp.le.s32.totalorder 1, %s9
    %p156 = scmp.lt.s32.totalorder %s9, 3
    %p157 = pnand %p155, %p156
    %p158 = pneg %p157
    // Predicated region
    $region29: #{focus_forward.3} parent=5 // pred_check
      _
    $region30: #{focus_forward.3} parent=5 // pred_check_branch
      %160 = sbr.rel (%p157) target = $region32
    $region31: #{focus_forward.3} parent=5 // pred_region
      %s161 = ssub.s32 %s9, 1
      %p162 = scmp.lt.s32.totalorder %s18, 1
      %s163 = scalar_select %p162, %s18, 1
      %p164 = scmp.lt.s32.totalorder %s19, 0
      %s165 = scalar_select %p164, %s19, 0
      %s166 = smul.addr %s163, 2
      %s167 = sadd.s32 %s165, %s166
      %s168 = smul.addr %s167, 8
      %s169 = scalar_lea.vmem %s0, %s168
      %p170 = pneg %p49
      %p171 = pneg %p46
      %p172 = pneg %p70
      %p173 = pneg %p67
      %p174 = pneg %p91
      %p175 = pneg %p88
      %p176 = pneg %p119
      %p177 = pneg %p116
      %p178 = scmp.lt.s32.totalorder %s18, 1
      %s179 = scalar_select %p178, %s18, 1
      %p180 = scmp.lt.s32.totalorder %s19, 0
      %s181 = scalar_select %p180, %s19, 0
      %s182 = sadd.s32 %s181, %s179
      %s183 = smul.addr %s182, 8
      %s184 = scalar_lea.vmem %s3, %s183
      %p185 = scmp.lt.s32.totalorder %s18, 1
      %s186 = scalar_select %p185, %s18, 1
      %p187 = scmp.lt.s32.totalorder %s19, 0
      %s188 = scalar_select %p187, %s19, 0
      %s189 = smul.addr %s186, 2
      %s190 = sadd.s32 %s188, %s189
      %s191 = smul.addr %s190, 8
      %s192 = scalar_lea.vmem %s0, %s191
      %p193 = scmp.lt.s32.totalorder %s18, 1
      %s194 = scalar_select %p193, %s18, 1
      %p195 = scmp.lt.s32.totalorder %s19, 0
      %s196 = scalar_select %p195, %s19, 0
      %s197 = sadd.s32 %s196, %s194
      %s198 = smul.addr %s197, 8
      %s199 = scalar_lea.vmem %s3, %s198
      %v200 = vld [vmem:[%s1] sm:$0xff]
      %v201 = vld [vmem:[%s192] sm:$0xff]
      %v202 = vld [vmem:[%s192 + $0x8] sm:$0xff]
      %v203 = vld [vmem:[%s2] sm:$0xff]
      %205 = vset.pattern.permute.xlu0 0
      %206 = vperm.xlu0 %205, %v203
      %v207 = vpop.permute.xlu0 %206
      %vm209 = vcmask 130048
      %v211 = vsel %vm209, %v200, 0
      %213 = vmatprep.subr.mxu0 0.0
      %214 = vmatpush1.msra.mxu0 %v201
      %215 = vmatprep.subr.mxu0 0.0
      %216 = vmatpush1.msra.mxu0 %v202
      %217 = vmatprep.subr.mxu0 0.0
      %218 = vmatpush1.msra.mxu0 0.0
      %219 = vmatprep.subr.mxu0 0.0
      %220 = vmatpush1.msra.mxu0 0.0
      %221 = vmatprep.subr.mxu0 0.0
      %222 = vmatpush1.msra.mxu0 0.0
      %223 = vmatprep.subr.mxu0 0.0
      %224 = vmatpush1.msra.mxu0 0.0
      %225 = vmatprep.subr.mxu0 0.0
      %226 = vmatpush1.msra.mxu0 0.0
      %227 = vmatprep.subr.mxu0 0.0
      %228 = vmatpush1.msra.mxu0 0.0
      %229 = vmatprep.subr.mxu0 0.0
      %230 = vmatpush1.msra.mxu0 0.0
      %231 = vmatprep.subr.mxu0 0.0
      %232 = vmatpush1.msra.mxu0 0.0
      %233 = vmatprep.subr.mxu0 0.0
      %234 = vmatpush1.msra.mxu0 0.0
      %235 = vmatprep.subr.mxu0 0.0
      %236 = vmatpush1.msra.mxu0 0.0
      %237 = vmatprep.subr.mxu0 0.0
      %238 = vmatpush1.msra.mxu0 0.0
      %239 = vmatprep.subr.mxu0 0.0
      %240 = vmatpush1.msra.mxu0 0.0
      %241 = vmatprep.subr.mxu0 0.0
      %242 = vmatpush1.msra.mxu0 0.0
      %243 = vmatprep.subr.mxu0 0.0
      %244 = vmatpush1.msra.mxu0 0.0
      %245 = vmatprep.subr.mxu0 0.0
      %246 = vmatpush1.msra.mxu0 0.0
      %247 = vmatprep.subr.mxu0 0.0
      %248 = vmatpush1.msra.mxu0 0.0
      %249 = vmatprep.subr.mxu0 0.0
      %250 = vmatpush1.msra.mxu0 0.0
      %251 = vmatprep.subr.mxu0 0.0
      %252 = vmatpush1.msra.mxu0 0.0
      %253 = vmatprep.subr.mxu0 0.0
      %254 = vmatpush1.msra.mxu0 0.0
      %255 = vmatprep.subr.mxu0 0.0
      %256 = vmatpush1.msra.mxu0 0.0
      %257 = vmatprep.subr.mxu0 0.0
      %258 = vmatpush1.msra.mxu0 0.0
      %259 = vmatprep.subr.mxu0 0.0
      %260 = vmatpush1.msra.mxu0 0.0
      %261 = vmatprep.subr.mxu0 0.0
      %262 = vmatpush1.msra.mxu0 0.0
      %263 = vmatprep.subr.mxu0 0.0
      %264 = vmatpush1.msra.mxu0 0.0
      %265 = vmatprep.subr.mxu0 0.0
      %266 = vmatpush1.msra.mxu0 0.0
      %267 = vmatprep.subr.mxu0 0.0
      %268 = vmatpush1.msra.mxu0 0.0
      %269 = vmatprep.subr.mxu0 0.0
      %270 = vmatpush1.msra.mxu0 0.0
      %271 = vmatprep.subr.mxu0 0.0
      %272 = vmatpush1.msra.mxu0 0.0
      %273 = vmatprep.subr.mxu0 0.0
      %274 = vmatpush1.msra.mxu0 0.0
      %275 = vmatprep.subr.mxu0 0.0
      %276 = vmatpush1.msra.mxu0 0.0
      %277 = vmatprep.mubr.f32.mxu0 0.0
      %278 = vmatmul.mubr.f32.gmra.mrb[0].mxu0 %v211
      %v279 = vpop.f32.mrb[0].mxu0
      %v280 = vadd.f32 %v207, %v279
      %v281 = vpop.f32.mrb[0].mxu0
      %282 = vdwg.mxu0
      %v283 = vxor.u32 %v280, 2147483648
      %v284 = vmul.f32 %v283, 1.442695
      %v285 = vpow.pop %v284
      %v286 = vadd.f32 %v285, 1.0
      %v287 = vrcp.pop %v286
      %v288 = vmul.f32 1.0, %v287
      %v289 = vmul.f32 %v280, %v288
      %290 = vst [vmem:[%s199] sm:$0xff] %v289
      %p291 = scmp.lt.s32.totalorder %s18, 1
      %s292 = scalar_select %p291, %s18, 1
      %p293 = scmp.lt.s32.totalorder %s19, 0
      %s294 = scalar_select %p293, %s19, 0
      %s295 = sadd.s32 %s294, %s292
      %s296 = smul.addr %s295, 8
      %s297 = scalar_lea.vmem %s3, %s296
      // Predicated region
      $region33: #{focus_forward.3} parent=31 // pred_check
        %p298 = pneg %p116
      $region34: #{focus_forward.3} parent=31 // pred_check_branch
        %300 = sbr.rel (%p298) target = $region36
      $region35: #{focus_forward.3} parent=31 // pred_region
        _
      $region36: #{focus_forward.3} parent=31 // pred_fallthru
        _
    $region32: #{focus_forward.3} parent=5 // pred_fallthru
      _
    %p301 = scmp.le.s32.totalorder 2, %s9
    // Predicated region
    $region37: #{focus_forward.3} parent=5 // pred_check
      %p302 = pneg %p301
    $region38: #{focus_forward.3} parent=5 // pred_check_branch
      %304 = sbr.rel (%p302) target = $region40
    $region39: #{focus_forward.3} parent=5 // pred_region
      %s305 = ssub.s32 %s9, 2
      // Predicated region
      $region41: #{focus_forward.3} parent=39 // pred_check
        %p306 = pneg %p122
      $region42: #{focus_forward.3} parent=39 // pred_check_branch
        %308 = sbr.rel (%p306) target = $region44
      $region43: #{focus_forward.3} parent=39 // pred_region
        %p309 = scmp.lt.s32.totalorder %s20, 1
        %s310 = scalar_select %p309, %s20, 1
        %p311 = scmp.lt.s32.totalorder %s21, 0
        %s312 = scalar_select %p311, %s21, 0
        %s313 = sadd.s32 %s312, %s310
        %s314 = smul.addr %s313, 8
        %s315 = scalar_lea.vmem %s3, %s314
      $region44: #{focus_forward.3} parent=39 // pred_fallthru
        _
    $region40: #{focus_forward.3} parent=5 // pred_fallthru
      _
  $region6: #{focus_forward.3} parent=0 // loop_footer
    %s13 = sadd.s32 1, %s9
  $region7: #{focus_forward.3} parent=0 // loop_footer_branch
    %8 = sbr.rel target = $region3
  $region8: #{focus_forward.3} parent=0 // loop_exit
    _

</llo_original>
